<compile_context>
chip_gen: v7x
topology: tpu7x:2x2x1
jax: 0.10.0
libtpu: 0.0.40
codegen_flags: <defaults>
</compile_context>

<pallas_src>
import jax
import jax.numpy as jnp
from jax.experimental import pallas as pl
from jax.experimental.pallas import tpu as pltpu

_LANES = 512                            # lane width (multiple of 128)
_TARGET_TILE_BYTES = 4 * 1024 * 1024    # ~4 MiB per block for large tensors
_SINGLE_BLOCK_BYTES = 512 * 1024        # below this: one full-array block
_VMEM_LIMIT_BYTES = 32 * 1024 * 1024    # safe on v5e/v6e/v7x


def _relu_kernel(x_ref, o_ref):
    # Elementwise ReLU on the whole VMEM tile (VPU op).
    # dtype-matched zero so integer inputs also behave correctly.
    zero = jnp.zeros((), dtype=x_ref.dtype)
    o_ref[...] = jnp.maximum(x_ref[...], zero)


@jax.jit
def relu_pallas(x: jax.Array) -> jax.Array:
    """ReLU(x) with identical shape/dtype semantics to torch.nn.ReLU."""
    orig_shape = x.shape
    n = x.size
    itemsize = jnp.dtype(x.dtype).itemsize

    # Lane-dense [rows, _LANES] view.  Only pad to a multiple of the lane
    # width when strictly necessary (zero pad for the densenet shape).
    rows = -(-n // _LANES)
    n_slab = rows * _LANES

    x_flat = x.reshape(-1)
    if n_slab != n:
        x_flat = jnp.pad(x_flat, (0, n_slab - n))
    x2d = x_flat.reshape(rows, _LANES)

    slab_bytes = n_slab * itemsize
    if slab_bytes <= _SINGLE_BLOCK_BYTES or rows <= 8:
        # Small tensor: one full-array block (block == full array dims is
        # exempt from the (8,128) divisibility rule), no grid stepping cost.
        tile_r = rows
    else:
        # ~_TARGET_TILE_BYTES per block, rows a multiple of 8.
        tile_r = max(8, (_TARGET_TILE_BYTES // (_LANES * itemsize)) // 8 * 8)
        # Guarantee >= 2 tiles so ("parallel",) shards across v7x's 2 TCs.
        tile_r = min(tile_r, max(8, (rows // 2) // 8 * 8))
        tile_r = min(tile_r, rows)

    num_tiles = pl.cdiv(rows, tile_r)   # trailing partial block is masked

    out2d = pl.pallas_call(
        _relu_kernel,
        out_shape=jax.ShapeDtypeStruct((rows, _LANES), x.dtype),
        grid_spec=pltpu.PrefetchScalarGridSpec(
            num_scalar_prefetch=0,
            grid=(num_tiles,),
            in_specs=[pl.BlockSpec((tile_r, _LANES), lambda i: (i, 0))],
            out_specs=pl.BlockSpec((tile_r, _LANES), lambda i: (i, 0)),
        ),
        compiler_params=pltpu.CompilerParams(
            dimension_semantics=("parallel",),
            vmem_limit_bytes=_VMEM_LIMIT_BYTES,
        ),
        cost_estimate=pl.CostEstimate(
            flops=n, transcendentals=0, bytes_accessed=2 * n * itemsize),
    )(x2d)

    out_flat = out2d.reshape(-1)
    if n_slab != n:
        out_flat = out_flat[:n]
    return out_flat.reshape(orig_shape)


if __name__ == "__main__":
    key = jax.random.PRNGKey(0)

    # Same shape as the module's example input: [1, 128, 14, 14], NCHW.
    x = jax.random.normal(key, (1, 128, 14, 14), dtype=jnp.float32)
    y = relu_pallas(x)
    jax.block_until_ready(y)
    assert y.shape == x.shape and y.dtype == x.dtype
    assert jnp.allclose(y, jnp.maximum(x, 0.0)), "mismatch vs reference ReLU"

    # Extra sanity check on a size that is NOT a multiple of the lane width
    # (exercises the rare pad + partial-block masking path).
    x_odd = jax.random.normal(jax.random.PRNGKey(1), (3, 1000), dtype=jnp.float32)
    y_odd = relu_pallas(x_odd)
    jax.block_until_ready(y_odd)
    assert jnp.allclose(y_odd, jnp.maximum(x_odd, 0.0)), "mismatch (odd shape)"

    print("KERNEL_OK")
</pallas_src>

<mosaic_0001>
module attributes {stable_mosaic.version = 11 : i64} {
  func.func @_relu_kernel(%arg0: i32, %arg1: memref<49x512xf32, #tpu.memory_space<vmem>>, %arg2: memref<49x512xf32, #tpu.memory_space<vmem>>) attributes {dimension_semantics = [#tpu.dimension_semantics<parallel>], iteration_bounds = array<i64: 1>, scalar_prefetch = 0 : i64, scratch_operands = 0 : i64, tpu.core_type = #tpu.core_type<tc>, window_params = [{transform_indices = @transform_0, window_bounds = array<i64: 49, 512>}, {transform_indices = @transform_1, window_bounds = array<i64: 49, 512>}]} {
    %c0 = arith.constant 0 : index
    %c0_0 = arith.constant 0 : index
    %0 = vector.load %arg1[%c0, %c0_0] : memref<49x512xf32, #tpu.memory_space<vmem>>, vector<49x512xf32>
    %cst = arith.constant 0.000000e+00 : f32
    %1 = vector.broadcast %cst : f32 to vector<49x512xf32>
    %2 = arith.maximumf %0, %1 : vector<49x512xf32>
    %c0_1 = arith.constant 0 : index
    %c0_2 = arith.constant 0 : index
    %3 = vector.load %arg2[%c0_1, %c0_2] : memref<49x512xf32, #tpu.memory_space<vmem>>, vector<49x512xf32>
    tpu.vector_store %arg2[%c0_1, %c0_2], %2 {strides = array<i32>} : memref<49x512xf32, #tpu.memory_space<vmem>>, vector<49x512xf32>,
    return
  }
  func.func @transform_0(%arg0: i32) -> (i32, i32) {
    %c0_i32 = arith.constant 0 : i32
    %c0_i32_0 = arith.constant 0 : i32
    return %arg0, %c0_i32 : i32, i32
  }
  func.func @transform_1(%arg0: i32) -> (i32, i32) {
    %c0_i32 = arith.constant 0 : i32
    %c0_i32_0 = arith.constant 0 : i32
    return %arg0, %c0_i32 : i32, i32
  }
}

</mosaic_0001>

<llo_original>
// kernel: relu_pallas.1
$region0: #{relu_pallas.1}
  #allocation0 [shape = 'u32[]', space=smem, size = 0x4, offset = 0x4, fixed_abs, tag = 'smem constant byte address 0x4 - core index']
  #allocation1 [shape = 'u32[144,128]{1,0:T(1,128)}', space=vmem, size = 0x12000, scoped, tag = 'internal scratch']
  %s0 = inlined_call_operand.vmem [shape: f32[49,512], index: 0, kind: input, shape index: {}]
  %s1 = inlined_call_operand.vmem [shape: f32[49,512], index: 1, kind: output, shape index: {}]
  %s2 = sld [smem:[#allocation0]]
  $region14: #{relu_pallas.1} parent=0
    _
  %s4 = ssub.s32 1, %s2
  %s5 = scalar_select 0, %s4, %s2
  // Predicated region
  $region2: #{relu_pallas.1} parent=0 // pred_check
    _
  $region3: #{relu_pallas.1} parent=0 // pred_check_branch
    %7 = sbr.rel (0) target = $region5
  $region4: #{relu_pallas.1} parent=0 // pred_region
    _
  $region5: #{relu_pallas.1} parent=0 // pred_fallthru
    _
  %v8 = vld [vmem:[%s0] sm:$0xff]
  %v9 = vld [vmem:[%s0 + $0x8] sm:$0xff]
  %v10 = vld [vmem:[%s0 + $0x10] sm:$0xff]
  %v11 = vld [vmem:[%s0 + $0x18] sm:$0xff]
  %v12 = vld [vmem:[%s0 + $0x20] sm:$0xff]
  %v13 = vld [vmem:[%s0 + $0x28] sm:$0xff]
  %v14 = vld [vmem:[%s0 + $0x30] sm:$0xff]
  %v15 = vld [vmem:[%s0 + $0x38] sm:$0xff]
  %v16 = vld [vmem:[%s0 + $0x40] sm:$0xff]
  %v17 = vld [vmem:[%s0 + $0x48] sm:$0xff]
  %v18 = vld [vmem:[%s0 + $0x50] sm:$0xff]
  %v19 = vld [vmem:[%s0 + $0x58] sm:$0xff]
  %v20 = vld [vmem:[%s0 + $0x60] sm:$0xff]
  %v21 = vld [vmem:[%s0 + $0x68] sm:$0xff]
  %v22 = vld [vmem:[%s0 + $0x70] sm:$0xff]
  %v23 = vld [vmem:[%s0 + $0x78] sm:$0xff]
  %v24 = vld [vmem:[%s0 + $0x80] sm:$0xff]
  %v25 = vld [vmem:[%s0 + $0x88] sm:$0xff]
  %v26 = vld [vmem:[%s0 + $0x90] sm:$0xff]
  %v27 = vld [vmem:[%s0 + $0x98] sm:$0xff]
  %v28 = vld [vmem:[%s0 + $0xa0] sm:$0xff]
  %v29 = vld [vmem:[%s0 + $0xa8] sm:$0xff]
  %v30 = vld [vmem:[%s0 + $0xb0] sm:$0xff]
  %v31 = vld [vmem:[%s0 + $0xb8] sm:$0xff]
  %v32 = vld [vmem:[%s0 + $0xc0] sm:$0x1]
  %v33 = vld [vmem:[%s0 + $0xc8] sm:$0x1]
  %v34 = vld [vmem:[%s0 + $0xd0] sm:$0x1]
  %v35 = vld [vmem:[%s0 + $0xd8] sm:$0x1]
  %v36 = vmax.f32 %v8, 0.0
  %v37 = vmax.f32 %v9, 0.0
  %v38 = vmax.f32 %v10, 0.0
  %v39 = vmax.f32 %v11, 0.0
  %v40 = vmax.f32 %v12, 0.0
  %v41 = vmax.f32 %v13, 0.0
  %v42 = vmax.f32 %v14, 0.0
  %v43 = vmax.f32 %v15, 0.0
  %v44 = vmax.f32 %v16, 0.0
  %v45 = vmax.f32 %v17, 0.0
  %v46 = vmax.f32 %v18, 0.0
  %v47 = vmax.f32 %v19, 0.0
  %v48 = vmax.f32 %v20, 0.0
  %v49 = vmax.f32 %v21, 0.0
  %v50 = vmax.f32 %v22, 0.0
  %v51 = vmax.f32 %v23, 0.0
  %v52 = vmax.f32 %v24, 0.0
  %v53 = vmax.f32 %v25, 0.0
  %v54 = vmax.f32 %v26, 0.0
  %v55 = vmax.f32 %v27, 0.0
  %v56 = vmax.f32 %v28, 0.0
  %v57 = vmax.f32 %v29, 0.0
  %v58 = vmax.f32 %v30, 0.0
  %v59 = vmax.f32 %v31, 0.0
  %v60 = vmax.f32 %v32, 0.0
  %v61 = vmax.f32 %v33, 0.0
  %v62 = vmax.f32 %v34, 0.0
  %v63 = vmax.f32 %v35, 0.0
  %64 = vst [vmem:[%s1] sm:$0xff] %v36
  %65 = vst [vmem:[%s1 + $0x8] sm:$0xff] %v37
  %66 = vst [vmem:[%s1 + $0x10] sm:$0xff] %v38
  %67 = vst [vmem:[%s1 + $0x18] sm:$0xff] %v39
  %68 = vst [vmem:[%s1 + $0x20] sm:$0xff] %v40
  %69 = vst [vmem:[%s1 + $0x28] sm:$0xff] %v41
  %70 = vst [vmem:[%s1 + $0x30] sm:$0xff] %v42
  %71 = vst [vmem:[%s1 + $0x38] sm:$0xff] %v43
  %72 = vst [vmem:[%s1 + $0x40] sm:$0xff] %v44
  %73 = vst [vmem:[%s1 + $0x48] sm:$0xff] %v45
  %74 = vst [vmem:[%s1 + $0x50] sm:$0xff] %v46
  %75 = vst [vmem:[%s1 + $0x58] sm:$0xff] %v47
  %76 = vst [vmem:[%s1 + $0x60] sm:$0xff] %v48
  %77 = vst [vmem:[%s1 + $0x68] sm:$0xff] %v49
  %78 = vst [vmem:[%s1 + $0x70] sm:$0xff] %v50
  %79 = vst [vmem:[%s1 + $0x78] sm:$0xff] %v51
  %80 = vst [vmem:[%s1 + $0x80] sm:$0xff] %v52
  %81 = vst [vmem:[%s1 + $0x88] sm:$0xff] %v53
  %82 = vst [vmem:[%s1 + $0x90] sm:$0xff] %v54
  %83 = vst [vmem:[%s1 + $0x98] sm:$0xff] %v55
  %84 = vst [vmem:[%s1 + $0xa0] sm:$0xff] %v56
  %85 = vst [vmem:[%s1 + $0xa8] sm:$0xff] %v57
  %86 = vst [vmem:[%s1 + $0xb0] sm:$0xff] %v58
  %87 = vst [vmem:[%s1 + $0xb8] sm:$0xff] %v59
  %88 = vst [vmem:[%s1 + $0xc0] sm:$0x1] %v60
  %89 = vst [vmem:[%s1 + $0xc8] sm:$0x1] %v61
  %90 = vst [vmem:[%s1 + $0xd0] sm:$0x1] %v62
  %91 = vst [vmem:[%s1 + $0xd8] sm:$0x1] %v63
  // Predicated region
  $region6: #{relu_pallas.1} parent=0 // pred_check
    _
  $region7: #{relu_pallas.1} parent=0 // pred_check_branch
    %93 = sbr.rel (0) target = $region9
  $region8: #{relu_pallas.1} parent=0 // pred_region
    _
  $region9: #{relu_pallas.1} parent=0 // pred_fallthru
    _
  // Predicated region
  $region10: #{relu_pallas.1} parent=0 // pred_check
    _
  $region11: #{relu_pallas.1} parent=0 // pred_check_branch
    %95 = sbr.rel (0) target = $region13
  $region12: #{relu_pallas.1} parent=0 // pred_region
    _
  $region13: #{relu_pallas.1} parent=0 // pred_fallthru
    _

</llo_original>
